<compile_context>
chip_gen: v5e
topology: v5e:2x2
jax: 0.10.0
libtpu: 0.0.40
codegen_flags: <defaults>
</compile_context>

<pallas_src>
import jax
import jax.numpy as jnp
from jax.experimental import pallas as pl
from jax.experimental.pallas import tpu as pltpu

LANE = 128      # vreg lane width
SUBLANE = 8     # vreg sublane count (f32)


def _round_up(x, m):
    return (x + m - 1) // m * m


def _pick_batch_tile(batch, block_b):
    """Batch tile: multiple of 8, capped at block_b, >=2 grid steps when possible."""
    if batch <= SUBLANE:
        return batch                       # one block equal to the full batch dim
    b8 = _round_up(batch, SUBLANE)
    tb = min(_round_up(block_b, SUBLANE), b8)
    if tb >= b8 and b8 >= 2 * SUBLANE:
        # Cap at ~half the batch so grid >= 2 and the "parallel" axis can be
        # sharded across v7x's two TensorCores (no effect on v5e/v6e).
        tb = _round_up(pl.cdiv(b8, 2), SUBLANE)
    return tb


# ----------------------------------------------------------------------------- kernel
def sequential_kernel(x_ref, w1_ref, b1_ref, w2_ref, b2_ref, o_ref):
    # In-kernel activation cast (free: VPU slack) instead of a wrapper-side
    # whole-batch XLA cast pass over HBM.
    x = x_ref[...].astype(w1_ref.dtype)
    # Linear #1 on the MXU, f32 accumulation.
    h = jnp.dot(x, w1_ref[...], preferred_element_type=jnp.float32)
    # Bias + ReLU epilogue in f32 (v5e VPU has no bf16 path; f32 is safe everywhere).
    h = jnp.maximum(h + b1_ref[...], 0.0)
    # Linear #2: feed the MXU in the weight dtype (bf16 on the fast path), f32 acc.
    y = jnp.dot(h.astype(w2_ref.dtype), w2_ref[...],
                preferred_element_type=jnp.float32)
    y = y + b2_ref[...]
    o_ref[...] = y.astype(o_ref.dtype)


# ----------------------------------------------------------------------------- wrapper
def sequential_forward(x, w1, b1, w2, b2, *, block_b=8192, out_dtype=None):
    """Fused Sequential(Linear, ReLU, Linear) forward.

    `w1`/`w2` are stored pre-transposed as (in, out); `b1`/`b2` are (1, out) or
    (out,). The output has the logical shape (B, d_out) and dtype `out_dtype`
    (defaults to x.dtype).
    """
    B, d_in = x.shape
    hid = w1.shape[1]
    d_out = w2.shape[1]
    assert w1.shape[0] == d_in and w2.shape[0] == hid
    if out_dtype is None:
        out_dtype = x.dtype

    b1f = jnp.asarray(b1, jnp.float32).reshape(1, hid)
    b2f = jnp.asarray(b2, jnp.float32).reshape(1, d_out)

    tb = _pick_batch_tile(B, block_b)
    grid = (pl.cdiv(B, tb),)

    # Advisory cost estimate for the XLA scheduler.
    flops = 2 * B * (d_in * hid + hid * d_out)
    bytes_accessed = int(
        B * d_in * jnp.dtype(x.dtype).itemsize            # x
        + d_in * hid * jnp.dtype(w1.dtype).itemsize       # w1
        + hid * 4                                         # b1 (f32)
        + hid * d_out * jnp.dtype(w2.dtype).itemsize      # w2
        + d_out * 4                                       # b2 (f32)
        + B * d_out * jnp.dtype(out_dtype).itemsize       # out
    )

    vmem = pltpu.MemorySpace.VMEM

    out = pl.pallas_call(
        sequential_kernel,
        out_shape=jax.ShapeDtypeStruct((B, d_out), out_dtype),
        grid_spec=pltpu.PrefetchScalarGridSpec(
            num_scalar_prefetch=0,
            grid=grid,
            in_specs=[
                # activations: tiled along the batch grid axis; trailing partial
                # block (when tb does not divide B) is masked by Pallas.
                pl.BlockSpec((tb, d_in), lambda i: (i, 0), memory_space=vmem),
                # weights / biases: constant block index -> fetched once,
                # VMEM-resident, never re-DMAed per grid step.
                pl.BlockSpec((d_in, hid), lambda i: (0, 0), memory_space=vmem),
                pl.BlockSpec((1, hid), lambda i: (0, 0), memory_space=vmem),
                pl.BlockSpec((hid, d_out), lambda i: (0, 0), memory_space=vmem),
                pl.BlockSpec((1, d_out), lambda i: (0, 0), memory_space=vmem),
            ],
            # logical-width output block (no lane padding, no external slice)
            out_specs=pl.BlockSpec((tb, d_out), lambda i: (i, 0),
                                   memory_space=vmem),
        ),
        compiler_params=pltpu.CompilerParams(
            # batch axis is embarrassingly parallel -> shards across v7x's 2 TCs
            dimension_semantics=("parallel",),
        ),
        cost_estimate=pl.CostEstimate(flops=flops, transcendentals=0,
                                      bytes_accessed=bytes_accessed),
    )(x, w1, b1f, w2, b2f)

    return out


# ----------------------------------------------------------------------------- params
def init_linear_params(key, fan_in, fan_out, dtype=jnp.float32):
    # Deterministic PyTorch-style uniform(-1/sqrt(fan_in), 1/sqrt(fan_in)) init.
    kw, kb = jax.random.split(key)
    bound = 1.0 / (fan_in ** 0.5)
    # Stored already transposed to (in, out) — see layout comment above.
    w = jax.random.uniform(kw, (fan_in, fan_out), dtype, -bound, bound)
    b = jax.random.uniform(kb, (1, fan_out), dtype, -bound, bound)
    return w, b


# ----------------------------------------------------------------------------- test
if __name__ == "__main__":
    key = jax.random.PRNGKey(0)
    k_x, k_x2, k_l1, k_l2 = jax.random.split(key, 4)

    B, D_IN, HID, D_OUT = 8, 32, 64, 16
    x = jax.random.normal(k_x, (B, D_IN), jnp.float32)
    w1, b1 = init_linear_params(k_l1, D_IN, HID)
    w2, b2 = init_linear_params(k_l2, HID, D_OUT)

    # Pure-JAX reference of the same Sequential chain.
    def ref_fn(xx):
        return jnp.maximum(xx @ w1 + b1, 0.0) @ w2 + b2

    # --- f32 path, single grid step ------------------------------------------
    out_f32 = jax.block_until_ready(sequential_forward(x, w1, b1, w2, b2))
    assert out_f32.shape == (B, D_OUT) and out_f32.dtype == jnp.float32
    assert jnp.allclose(out_f32, ref_fn(x), atol=1e-5, rtol=1e-5)

    # --- bf16-weight MXU path, f32 accumulation, bf16 output ------------------
    out_bf16 = sequential_forward(x, w1.astype(jnp.bfloat16), b1,
                                  w2.astype(jnp.bfloat16), b2,
                                  out_dtype=jnp.bfloat16)
    out_bf16 = jax.block_until_ready(out_bf16)
    assert out_bf16.shape == (B, D_OUT) and out_bf16.dtype == jnp.bfloat16
    assert jnp.allclose(out_bf16.astype(jnp.float32), ref_fn(x),
                        atol=5e-2, rtol=5e-2)

    # --- multi-step grid with a masked trailing partial block (B=20, tb=16) ---
    B2 = 20
    x2 = jax.random.normal(k_x2, (B2, D_IN), jnp.float32)
    out_part = jax.block_until_ready(sequential_forward(x2, w1, b1, w2, b2))
    assert out_part.shape == (B2, D_OUT)
    assert jnp.allclose(out_part, ref_fn(x2), atol=1e-5, rtol=1e-5)

    print("KERNEL_OK")
</pallas_src>

<mosaic_0001>
module attributes {stable_mosaic.version = 11 : i64} {
  func.func @sequential_kernel(%arg0: i32, %arg1: memref<8x32xf32, #tpu.memory_space<vmem>>, %arg2: memref<32x64xf32, #tpu.memory_space<vmem>>, %arg3: memref<1x64xf32, #tpu.memory_space<vmem>>, %arg4: memref<64x16xf32, #tpu.memory_space<vmem>>, %arg5: memref<1x16xf32, #tpu.memory_space<vmem>>, %arg6: memref<8x16xf32, #tpu.memory_space<vmem>>) attributes {dimension_semantics = [#tpu.dimension_semantics<parallel>], iteration_bounds = array<i64: 1>, scalar_prefetch = 0 : i64, scratch_operands = 0 : i64, tpu.core_type = #tpu.core_type<tc>, window_params = [{transform_indices = @transform_0, window_bounds = array<i64: 8, 32>}, {pipeline_mode = #tpu.pipeline_mode<synchronous>, transform_indices = @transform_1, window_bounds = array<i64: 32, 64>}, {pipeline_mode = #tpu.pipeline_mode<synchronous>, transform_indices = @transform_2, window_bounds = array<i64: 1, 64>}, {pipeline_mode = #tpu.pipeline_mode<synchronous>, transform_indices = @transform_3, window_bounds = array<i64: 64, 16>}, {pipeline_mode = #tpu.pipeline_mode<synchronous>, transform_indices = @transform_4, window_bounds = array<i64: 1, 16>}, {transform_indices = @transform_5, window_bounds = array<i64: 8, 16>}]} {
    %c0 = arith.constant 0 : index
    %c0_0 = arith.constant 0 : index
    %0 = vector.load %arg1[%c0, %c0_0] : memref<8x32xf32, #tpu.memory_space<vmem>>, vector<8x32xf32>
    %c0_1 = arith.constant 0 : index
    %c0_2 = arith.constant 0 : index
    %1 = vector.load %arg2[%c0_1, %c0_2] : memref<32x64xf32, #tpu.memory_space<vmem>>, vector<32x64xf32>
    %cst = arith.constant dense<0.000000e+00> : vector<8x64xf32>
    %2 = tpu.matmul %0, %1, %cst {dimension_numbers = #tpu.dot_dimension_numbers<[1], [0], [0], [1], [0, 0, 1, 1], [], []>} : vector<8x32xf32>, vector<32x64xf32>, vector<8x64xf32> -> vector<8x64xf32>
    %c0_3 = arith.constant 0 : index
    %c0_4 = arith.constant 0 : index
    %3 = vector.load %arg3[%c0_3, %c0_4] : memref<1x64xf32, #tpu.memory_space<vmem>>, vector<1x64xf32>
    %4 = vector.broadcast %3 : vector<1x64xf32> to vector<8x64xf32>
    %5 = arith.addf %2, %4 : vector<8x64xf32>
    %cst_5 = arith.constant 0.000000e+00 : f32
    %6 = vector.broadcast %cst_5 : f32 to vector<8x64xf32>
    %7 = arith.maximumf %5, %6 : vector<8x64xf32>
    %c0_6 = arith.constant 0 : index
    %c0_7 = arith.constant 0 : index
    %8 = vector.load %arg4[%c0_6, %c0_7] : memref<64x16xf32, #tpu.memory_space<vmem>>, vector<64x16xf32>
    %cst_8 = arith.constant dense<0.000000e+00> : vector<8x16xf32>
    %9 = tpu.matmul %7, %8, %cst_8 {dimension_numbers = #tpu.dot_dimension_numbers<[1], [0], [0], [1], [0, 0, 1, 1], [], []>} : vector<8x64xf32>, vector<64x16xf32>, vector<8x16xf32> -> vector<8x16xf32>
    %c0_9 = arith.constant 0 : index
    %c0_10 = arith.constant 0 : index
    %10 = vector.load %arg5[%c0_9, %c0_10] : memref<1x16xf32, #tpu.memory_space<vmem>>, vector<1x16xf32>
    %11 = vector.broadcast %10 : vector<1x16xf32> to vector<8x16xf32>
    %12 = arith.addf %9, %11 : vector<8x16xf32>
    %c0_11 = arith.constant 0 : index
    %c0_12 = arith.constant 0 : index
    %13 = vector.load %arg6[%c0_11, %c0_12] : memref<8x16xf32, #tpu.memory_space<vmem>>, vector<8x16xf32>
    tpu.vector_store %arg6[%c0_11, %c0_12], %12 {strides = array<i32>} : memref<8x16xf32, #tpu.memory_space<vmem>>, vector<8x16xf32>,
    return
  }
  func.func @transform_0(%arg0: i32) -> (i32, i32) {
    %c0_i32 = arith.constant 0 : i32
    %c0_i32_0 = arith.constant 0 : i32
    return %arg0, %c0_i32 : i32, i32
  }
  func.func @transform_1(%arg0: i32) -> (i32, i32) {
    %c0_i32 = arith.constant 0 : i32
    %c0_i32_0 = arith.constant 0 : i32
    %c0_i32_1 = arith.constant 0 : i32
    return %c0_i32, %c0_i32_0 : i32, i32
  }
  func.func @transform_2(%arg0: i32) -> (i32, i32) {
    %c0_i32 = arith.constant 0 : i32
    %c0_i32_0 = arith.constant 0 : i32
    %c0_i32_1 = arith.constant 0 : i32
    return %c0_i32, %c0_i32_0 : i32, i32
  }
  func.func @transform_3(%arg0: i32) -> (i32, i32) {
    %c0_i32 = arith.constant 0 : i32
    %c0_i32_0 = arith.constant 0 : i32
    %c0_i32_1 = arith.constant 0 : i32
    return %c0_i32, %c0_i32_0 : i32, i32
  }
  func.func @transform_4(%arg0: i32) -> (i32, i32) {
    %c0_i32 = arith.constant 0 : i32
    %c0_i32_0 = arith.constant 0 : i32
    %c0_i32_1 = arith.constant 0 : i32
    return %c0_i32, %c0_i32_0 : i32, i32
  }
  func.func @transform_5(%arg0: i32) -> (i32, i32) {
    %c0_i32 = arith.constant 0 : i32
    %c0_i32_0 = arith.constant 0 : i32
    return %arg0, %c0_i32 : i32, i32
  }
}

</mosaic_0001>

<llo_original>
// kernel: tpu_custom_call.1
$region0: #{tpu_custom_call.1}
  #allocation0 [shape = 'u32[]', space=smem, size = 0x4, offset = 0x4, fixed_abs, tag = 'smem constant byte address 0x4 - core index']
  #allocation1 [shape = 'u32[72,128]{1,0:T(1,128)}', space=vmem, size = 0x9000, scoped, tag = 'internal scratch']
  %s0 = inlined_call_operand.vmem [shape: f32[8,32], index: 0, kind: input, shape index: {}]
  %s1 = inlined_call_operand.vmem [shape: f32[32,64], index: 1, kind: input, shape index: {}]
  %s2 = inlined_call_operand.vmem [shape: f32[1,64], index: 2, kind: input, shape index: {}]
  %s3 = inlined_call_operand.vmem [shape: f32[64,16], index: 3, kind: input, shape index: {}]
  %s4 = inlined_call_operand.vmem [shape: f32[1,16], index: 4, kind: input, shape index: {}]
  %s5 = inlined_call_operand.hbm [shape: f32[8,16], index: 5, kind: output, shape index: {}]
  %s6 = sld [smem:[#allocation0]]
  $region30: #{tpu_custom_call.1} parent=0
    _
  %s8 = ssub.s32 1, %s6
  %s9 = scalar_select 0, %s8, %s6
  $region1: #{tpu_custom_call.1} parent=0
    #allocation2 [shape = 'u8[4096]{0}', space=vmem, size = 0x1000, scoped, tag = 'output window, operand 0, single buffered']
    #allocation3 [shape = 's32[1]{0}', space=sflag, size = 0x4, scoped, tag = 'scoped memory for tpu_custom_call.1']
    %10 = vsyncpa [#allocation3], 0
    // Predicated region
    $region2: #{tpu_custom_call.1} parent=1 // pred_check
      _
    $region3: #{tpu_custom_call.1} parent=1 // pred_check_branch
      %12 = sbr.rel (0) target = $region5
    $region4: #{tpu_custom_call.1} parent=1 // pred_region
      _
    $region5: #{tpu_custom_call.1} parent=1 // pred_fallthru
      _
    // Predicated region
    $region6: #{tpu_custom_call.1} parent=1 // pred_check
      _
    $region7: #{tpu_custom_call.1} parent=1 // pred_check_branch
      %14 = sbr.rel (0) target = $region9
    $region8: #{tpu_custom_call.1} parent=1 // pred_region
      _
    $region9: #{tpu_custom_call.1} parent=1 // pred_fallthru
      _
    // Predicated region
    $region10: #{tpu_custom_call.1} parent=1 // pred_check
      _
    $region11: #{tpu_custom_call.1} parent=1 // pred_check_branch
      %16 = sbr.rel (0) target = $region13
    $region12: #{tpu_custom_call.1} parent=1 // pred_region
      _
    $region13: #{tpu_custom_call.1} parent=1 // pred_fallthru
      _
    // Predicated region
    $region14: #{tpu_custom_call.1} parent=1 // pred_check
      _
    $region15: #{tpu_custom_call.1} parent=1 // pred_check_branch
      %18 = sbr.rel (0) target = $region17
    $region16: #{tpu_custom_call.1} parent=1 // pred_region
      _
    $region17: #{tpu_custom_call.1} parent=1 // pred_fallthru
      _
    // Predicated region
    $region18: #{tpu_custom_call.1} parent=1 // pred_check
      _
    $region19: #{tpu_custom_call.1} parent=1 // pred_check_branch
      %20 = sbr.rel (0) target = $region21
    $region20: #{tpu_custom_call.1} parent=1 // pred_region
      _
    $region21: #{tpu_custom_call.1} parent=1 // pred_fallthru
      _
    %v21 = vld [vmem:[%s0] sm:$0xff]
    %v22 = vld [vmem:[%s1] sm:$0xff]
    %v23 = vld [vmem:[%s1 + $0x8] sm:$0xff]
    %v24 = vld [vmem:[%s1 + $0x10] sm:$0xff]
    %v25 = vld [vmem:[%s1 + $0x18] sm:$0xff]
    %v26 = vld [vmem:[%s2] sm:$0x1]
    %v28 = vperm.slane %v26, 0
    %vm30 = vcmask 261120
    %v32 = vsel %vm30, %v21, 0
    %34 = vmatpush.msra.mxu0 0.0
    %35 = vmatpush.msra.mxu0 0.0
    %36 = vmatpush.msra.mxu0 0.0
    %37 = vmatpush.msra.mxu0 0.0
    %38 = vmatpush.msra.mxu0 0.0
    %39 = vmatpush.msra.mxu0 0.0
    %40 = vmatpush.msra.mxu0 0.0
    %41 = vmatpush.msra.mxu0 0.0
    %42 = vmatpush.msra.mxu0 0.0
    %43 = vmatpush.msra.mxu0 0.0
    %44 = vmatpush.msra.mxu0 0.0
    %45 = vmatpush.msra.mxu0 0.0
    %46 = vmatpush.msra.mxu0 %v25
    %47 = vmatpush.msra.mxu0 %v24
    %48 = vmatpush.msra.mxu0 %v23
    %49 = vmatpush.msra.mxu0 %v22
    %50 = vmatmul.f32.gmra.mxu0 %v32
    %v51 = vpop.f32.mrf.mxu0
    %v52 = vadd.f32 %v28, %v51
    %53 = vdwg.mxu0
    %v54 = vmax.f32 %v52, 0.0
    %v55 = vld [vmem:[%s3] sm:$0xff]
    %v56 = vld [vmem:[%s3 + $0x8] sm:$0xff]
    %v57 = vld [vmem:[%s3 + $0x10] sm:$0xff]
    %v58 = vld [vmem:[%s3 + $0x18] sm:$0xff]
    %v59 = vld [vmem:[%s3 + $0x20] sm:$0xff]
    %v60 = vld [vmem:[%s3 + $0x28] sm:$0xff]
    %v61 = vld [vmem:[%s3 + $0x30] sm:$0xff]
    %v62 = vld [vmem:[%s3 + $0x38] sm:$0xff]
    %v63 = vld [vmem:[%s4] sm:$0x1]
    %v65 = vperm.slane %v63, 0
    %vm67 = vcmask 523264
    %v69 = vsel %vm67, %v54, 0
    %71 = vmatpush.msra.mxu0 0.0
    %72 = vmatpush.msra.mxu0 0.0
    %73 = vmatpush.msra.mxu0 0.0
    %74 = vmatpush.msra.mxu0 0.0
    %75 = vmatpush.msra.mxu0 0.0
    %76 = vmatpush.msra.mxu0 0.0
    %77 = vmatpush.msra.mxu0 0.0
    %78 = vmatpush.msra.mxu0 0.0
    %79 = vmatpush.msra.mxu0 %v62
    %80 = vmatpush.msra.mxu0 %v61
    %81 = vmatpush.msra.mxu0 %v60
    %82 = vmatpush.msra.mxu0 %v59
    %83 = vmatpush.msra.mxu0 %v58
    %84 = vmatpush.msra.mxu0 %v57
    %85 = vmatpush.msra.mxu0 %v56
    %86 = vmatpush.msra.mxu0 %v55
    %87 = vmatmul.f32.gmra.mxu0 %v69
    %v88 = vpop.f32.mrf.mxu0
    %v89 = vadd.f32 %v65, %v88
    %90 = vdwg.mxu0
    %vm91 = vcmask 130048
    %92 = vst.msk [vmem:[#allocation2] sm:$0xff] %vm91, %v89
    // Predicated region
    $region22: #{tpu_custom_call.1} parent=1 // pred_check
      _
    $region23: #{tpu_custom_call.1} parent=1 // pred_check_branch
      %94 = sbr.rel (0) target = $region25
    $region24: #{tpu_custom_call.1} parent=1 // pred_region
      %96 = vsyncadd [#allocation3], 0
      %s98 = sshll.u32 [#allocation2], 4
      %s99 = int_to_ptr.vmem [resolvable:$true] %s98
      %s100 = sshll.u32 %s5, 4
      %s101 = int_to_ptr.hbm [resolvable:$true] %s100
      %103 = dma.vmem_to_hbm [thread:$0]  %s99, 128, %s101, [#allocation3]
    $region25: #{tpu_custom_call.1} parent=1 // pred_fallthru
      _
    // Predicated region
    $region26: #{tpu_custom_call.1} parent=1 // pred_check
      _
    $region27: #{tpu_custom_call.1} parent=1 // pred_check_branch
      %105 = sbr.rel (0) target = $region29
    $region28: #{tpu_custom_call.1} parent=1 // pred_region
      %107 = dma.done [#allocation3], 128
    $region29: #{tpu_custom_call.1} parent=1 // pred_fallthru
      _
    %108 = vsyncpa [#allocation3], 1

</llo_original>
